<compile_context>
chip_gen: v7x
topology: tpu7x:2x2x1
jax: 0.10.0
libtpu: 0.0.40
codegen_flags: <defaults>
</compile_context>

<pallas_src>
import functools

import jax
import jax.numpy as jnp
from jax.experimental import pallas as pl
from jax.experimental.pallas import tpu as pltpu


_ROLL_MODE = None  # "pltpu" | "pltpu_flipped" | "jnp"; detected once per process


def _detect_roll_mode() -> str:
    """Empirically determine pltpu.roll's rotation convention (cached)."""
    global _ROLL_MODE
    if _ROLL_MODE is not None:
        return _ROLL_MODE

    def probe(x_ref, o_ref):
        o_ref[...] = pltpu.roll(x_ref[...], 1, 1)

    try:
        x = jax.lax.broadcasted_iota(jnp.float32, (8, 128), 1)
        out = pl.pallas_call(
            probe, out_shape=jax.ShapeDtypeStruct((8, 128), jnp.float32))(x)
        out = jax.block_until_ready(out)
        if bool(out[0, 1] == 0.0):      # out[j] = in[j-1]  -> jnp.roll convention
            _ROLL_MODE = "pltpu"
        elif bool(out[0, 0] == 1.0):    # out[j] = in[j+1]  -> flipped convention
            _ROLL_MODE = "pltpu_flipped"
        else:                           # unexpected -> safe fallback
            _ROLL_MODE = "jnp"
    except Exception:
        _ROLL_MODE = "jnp"
    return _ROLL_MODE


def _lane_roll(v, jnp_shift, mode):
    """Rotate v along its last (lane) axis with jnp.roll semantics:
    result[..., j] = v[..., (j - jnp_shift) % n]."""
    n = v.shape[-1]
    if mode == "jnp":
        return jnp.roll(v, jnp_shift, axis=-1)
    shift = (-jnp_shift) % n if mode == "pltpu_flipped" else jnp_shift % n
    return pltpu.roll(v, shift, v.ndim - 1)


def _rope_kernel(cos_ref, sin_lo_ref, sin_hi_ref, x_ref, o_ref,
                 cos_sc, sin_lo_sc, sin_hi_sc, *, heads, d_head, roll_mode):
    """One (seq-tile, batch) block.

    cos_ref/sin_lo_ref/sin_hi_ref : (TS, D) tables (small HBM reads)
    x_ref, o_ref                  : (1, TS, H*D) in x.dtype
    *_sc                          : (TS, H*D) lane-dense scratch tables
    """
    half = d_head // 2

    # Expand the small tables to lane-dense scratch once per seq tile (b == 0);
    # they stay VMEM-resident across the inner batch loop.  Static unrolled
    # sub-tile stores (one per head) keep the lowering simple and robust.
    @pl.when(pl.program_id(1) == 0)
    def _():
        for h in range(heads):
            sl = slice(h * d_head, (h + 1) * d_head)
            cos_sc[:, sl] = cos_ref[...]
            sin_lo_sc[:, sl] = sin_lo_ref[...]
            sin_hi_sc[:, sl] = sin_hi_ref[...]

    xc = x_ref[0].astype(cos_sc.dtype)          # (TS, H*D); no-op for f32/bf16
    # Same-head x2 onto x1 lanes / same-head x1 onto x2 lanes.  Cross-head and
    # array-edge wrap lanes land only where the matching sin table is zero.
    x_lo = _lane_roll(xc, -half, roll_mode)     # value from lane j+half
    x_hi = _lane_roll(xc, half, roll_mode)      # value from lane j-half
    out = xc * cos_sc[...] + x_lo * sin_lo_sc[...] + x_hi * sin_hi_sc[...]
    o_ref[0] = out.astype(o_ref.dtype)


def _vmem_capacity_bytes() -> int:
    try:
        cap = getattr(pltpu.get_tpu_info(), "vmem_capacity_bytes", None)
        if cap:
            return int(cap)
    except Exception:
        pass
    return 64 << 20  # conservative: v7x per-TensorCore VMEM


def _round_up(x: int, m: int) -> int:
    return -(-x // m) * m


def _choose_seq_tile(S, HD, D, x_itemsize, tab_itemsize, vmem_budget):
    """Largest aligned seq tile whose pipelined working set fits the budget.

    Per seq row: x in + out (double-buffered)   -> 4 * HD * x_itemsize
                 3 expanded scratch tables      -> 3 * HD * tab_itemsize
                 3 small table inputs (dbl-buf) -> 6 * D * tab_itemsize
    """
    per_row = 4 * HD * x_itemsize + 3 * HD * tab_itemsize + 6 * D * tab_itemsize
    align = 16 if x_itemsize == 2 else 8
    ts = max(align, (vmem_budget // per_row) // align * align)
    return min(ts, _round_up(S, align))


def rope_pallas(x: jax.Array, inv_freq: jax.Array,
                seq_tile: int | None = None) -> jax.Array:
    """RoPE forward. x: (B, S, H, D); inv_freq: (D//2,); seq_dim = 1."""
    B, S, H, D = x.shape
    assert D % 2 == 0, "RoPE head dim must be even"
    half = D // 2
    assert inv_freq.shape == (half,)
    HD = H * D  # NOTE: peak store bandwidth needs H*D % 128 == 0 (lane-dense)
    x_itemsize = jnp.dtype(x.dtype).itemsize

    # bf16 inputs compute in bf16 (angles stay f32); everything else in f32.
    cd = jnp.bfloat16 if x.dtype == jnp.bfloat16 else jnp.float32
    cd_itemsize = jnp.dtype(cd).itemsize

    # Small (S, D) rotation tables; angles computed in f32 for long-S accuracy.
    pos = jnp.arange(S, dtype=jnp.float32)
    ang = pos[:, None] * inv_freq.astype(jnp.float32)[None, :]       # (S, half)
    sin = jnp.sin(ang)
    cos = jnp.cos(ang)
    zeros = jnp.zeros_like(sin)
    cos_d = jnp.concatenate([cos, cos], axis=-1).astype(cd)          # (S, D)
    sin_lo_d = jnp.concatenate([-sin, zeros], axis=-1).astype(cd)    # x1 lanes
    sin_hi_d = jnp.concatenate([zeros, sin], axis=-1).astype(cd)     # x2 lanes

    x_flat = x.reshape(B, S, HD)     # free, contiguous reshape

    vmem_cap = _vmem_capacity_bytes()
    ts = seq_tile if seq_tile is not None else _choose_seq_tile(
        S, HD, D, x_itemsize, cd_itemsize, vmem_budget=vmem_cap // 2)
    ns = pl.cdiv(S, ts)              # padded/masked tail tile if S % ts != 0

    kernel = functools.partial(_rope_kernel, heads=H, d_head=D,
                               roll_mode=_detect_roll_mode())

    out_flat = pl.pallas_call(
        kernel,
        out_shape=jax.ShapeDtypeStruct((B, S, HD), x.dtype),
        grid_spec=pltpu.PrefetchScalarGridSpec(
            num_scalar_prefetch=0,
            # s outer (megacore-parallel), b inner: table blocks keep the same
            # block index across the inner batch loop -> no re-DMA, and the
            # scratch expansion at b == 0 is amortized over B.
            grid=(ns, B),
            in_specs=[
                pl.BlockSpec((ts, D), lambda s, b: (s, 0)),          # cos
                pl.BlockSpec((ts, D), lambda s, b: (s, 0)),          # sin_lo
                pl.BlockSpec((ts, D), lambda s, b: (s, 0)),          # sin_hi
                pl.BlockSpec((1, ts, HD), lambda s, b: (b, s, 0)),   # x
            ],
            out_specs=pl.BlockSpec((1, ts, HD), lambda s, b: (b, s, 0)),
            scratch_shapes=[
                pltpu.VMEM((ts, HD), cd),    # cos, lane-dense
                pltpu.VMEM((ts, HD), cd),    # sin on x1 lanes (-sin), else 0
                pltpu.VMEM((ts, HD), cd),    # sin on x2 lanes (+sin), else 0
            ],
        ),
        compiler_params=pltpu.CompilerParams(
            dimension_semantics=("parallel", "arbitrary"),
            vmem_limit_bytes=(vmem_cap * 3) // 4),
        cost_estimate=pl.CostEstimate(
            flops=5 * B * S * HD,
            transcendentals=0,
            bytes_accessed=2 * B * S * HD * x_itemsize + 3 * S * D * cd_itemsize),
    )(cos_d, sin_lo_d, sin_hi_d, x_flat)

    return out_flat.reshape(B, S, H, D)


def make_inv_freq(input_dim: int) -> jax.Array:
    """Deterministic parameter init, mirrors RoPE.__init__."""
    assert input_dim % 2 == 0
    half = input_dim // 2
    freq_seq = -jnp.arange(half, dtype=jnp.float32) / float(half)
    return jnp.power(10000.0, freq_seq)                 # (half,)


def rope_ref(x: jax.Array, inv_freq: jax.Array) -> jax.Array:
    """Pure-JAX reference matching the PyTorch module (seq_dim=1)."""
    B, S, H, D = x.shape
    half = D // 2
    pos = jnp.arange(S, dtype=jnp.float32)
    sinusoid = pos[:, None] * inv_freq.astype(jnp.float32)[None, :]
    sin = jnp.sin(sinusoid)[None, :, None, :]
    cos = jnp.cos(sinusoid)[None, :, None, :]
    x1, x2 = x[..., :half], x[..., half:]
    out = jnp.concatenate([x1 * cos - x2 * sin, x2 * cos + x1 * sin], axis=-1)
    return out.astype(x.dtype)


if __name__ == "__main__":
    # TODO(synk): general multi-axis seq_dim tuples (2-D spatial RoPE) are not
    # implemented; this kernel covers the standard (B, S, H, D), seq_dim=1 case.
    B, S, H, D = 2, 8, 4, 32   # input_dim = 32 -> half = 16, H*D = 128 lanes
    key = jax.random.PRNGKey(0)
    x = jax.random.normal(key, (B, S, H, D), dtype=jnp.float32)

    inv_freq = make_inv_freq(D)

    out = jax.block_until_ready(rope_pallas(x, inv_freq))
    ref = rope_ref(x, inv_freq)

    assert out.shape == x.shape and out.dtype == x.dtype
    assert jnp.allclose(out, ref, atol=1e-5, rtol=1e-5), "mismatch vs reference"

    print("KERNEL_OK")
</pallas_src>

<mosaic_0001>
module attributes {stable_mosaic.version = 11 : i64} {
  func.func @probe(%arg0: memref<8x128xf32, #tpu.memory_space<vmem>>, %arg1: memref<8x128xf32, #tpu.memory_space<vmem>>) attributes {dimension_semantics = [], scalar_prefetch = 0 : i64, scratch_operands = 0 : i64, tpu.core_type = #tpu.core_type<tc>} {
    %c0 = arith.constant 0 : index
    %c0_0 = arith.constant 0 : index
    %0 = vector.load %arg0[%c0, %c0_0] : memref<8x128xf32, #tpu.memory_space<vmem>>, vector<8x128xf32>
    %c1_i32 = arith.constant 1 : i32
    %1 = tpu.dynamic_rotate %0 by %c1_i32 dim 1 : vector<8x128xf32>, i32 -> vector<8x128xf32>
    %c0_1 = arith.constant 0 : index
    %c0_2 = arith.constant 0 : index
    %2 = vector.load %arg1[%c0_1, %c0_2] : memref<8x128xf32, #tpu.memory_space<vmem>>, vector<8x128xf32>
    tpu.vector_store %arg1[%c0_1, %c0_2], %1 {strides = array<i32>} : memref<8x128xf32, #tpu.memory_space<vmem>>, vector<8x128xf32>,
    return
  }
}

module attributes {stable_mosaic.version = 11 : i64} {
  func.func @_rope_kernel(%arg0: i32, %arg1: i32, %arg2: memref<8x32xf32, #tpu.memory_space<vmem>>, %arg3: memref<8x32xf32, #tpu.memory_space<vmem>>, %arg4: memref<8x32xf32, #tpu.memory_space<vmem>>, %arg5: memref<1x8x128xf32, #tpu.memory_space<vmem>>, %arg6: memref<1x8x128xf32, #tpu.memory_space<vmem>>, %arg7: memref<8x128xf32, #tpu.memory_space<vmem>>, %arg8: memref<8x128xf32, #tpu.memory_space<vmem>>, %arg9: memref<8x128xf32, #tpu.memory_space<vmem>>) attributes {dimension_semantics = [#tpu.dimension_semantics<parallel>, #tpu.dimension_semantics<arbitrary>], iteration_bounds = array<i64: 1, 2>, scalar_prefetch = 0 : i64, scratch_operands = 3 : i64, tpu.core_type = #tpu.core_type<tc>, window_params = [{transform_indices = @transform_0, window_bounds = array<i64: 8, 32>}, {transform_indices = @transform_1, window_bounds = array<i64: 8, 32>}, {transform_indices = @transform_2, window_bounds = array<i64: 8, 32>}, {transform_indices = @transform_3, window_bounds = array<i64: 1, 8, 128>}, {transform_indices = @transform_4, window_bounds = array<i64: 1, 8, 128>}]} {
    %c0_i32 = arith.constant 0 : i32
    %0 = arith.cmpi eq, %arg1, %c0_i32 : i32
    %1 = arith.extui %0 : i1 to i32
    %c0_i32_0 = arith.constant 0 : i32
    %2 = arith.cmpi ne, %1, %c0_i32_0 : i32
    scf.if %2 {
      %c0_12 = arith.constant 0 : index
      %c0_13 = arith.constant 0 : index
      %22 = vector.load %arg2[%c0_12, %c0_13] : memref<8x32xf32, #tpu.memory_space<vmem>>, vector<8x32xf32>
      %c0_14 = arith.constant 0 : index
      %c0_15 = arith.constant 0 : index
      %23 = vector.load %arg7[%c0_14, %c0_15] : memref<8x128xf32, #tpu.memory_space<vmem>>, vector<8x32xf32>
      tpu.vector_store %arg7[%c0_14, %c0_15], %22 {strides = array<i32>} : memref<8x128xf32, #tpu.memory_space<vmem>>, vector<8x32xf32>,
      %c0_16 = arith.constant 0 : index
      %c0_17 = arith.constant 0 : index
      %24 = vector.load %arg3[%c0_16, %c0_17] : memref<8x32xf32, #tpu.memory_space<vmem>>, vector<8x32xf32>
      %c0_18 = arith.constant 0 : index
      %c0_19 = arith.constant 0 : index
      %25 = vector.load %arg8[%c0_18, %c0_19] : memref<8x128xf32, #tpu.memory_space<vmem>>, vector<8x32xf32>
      tpu.vector_store %arg8[%c0_18, %c0_19], %24 {strides = array<i32>} : memref<8x128xf32, #tpu.memory_space<vmem>>, vector<8x32xf32>,
      %c0_20 = arith.constant 0 : index
      %c0_21 = arith.constant 0 : index
      %26 = vector.load %arg4[%c0_20, %c0_21] : memref<8x32xf32, #tpu.memory_space<vmem>>, vector<8x32xf32>
      %c0_22 = arith.constant 0 : index
      %c0_23 = arith.constant 0 : index
      %27 = vector.load %arg9[%c0_22, %c0_23] : memref<8x128xf32, #tpu.memory_space<vmem>>, vector<8x32xf32>
      tpu.vector_store %arg9[%c0_22, %c0_23], %26 {strides = array<i32>} : memref<8x128xf32, #tpu.memory_space<vmem>>, vector<8x32xf32>,
      %c0_24 = arith.constant 0 : index
      %c0_25 = arith.constant 0 : index
      %28 = vector.load %arg2[%c0_24, %c0_25] : memref<8x32xf32, #tpu.memory_space<vmem>>, vector<8x32xf32>
      %c0_26 = arith.constant 0 : index
      %c32 = arith.constant 32 : index
      %29 = vector.load %arg7[%c0_26, %c32] : memref<8x128xf32, #tpu.memory_space<vmem>>, vector<8x32xf32>
      tpu.vector_store %arg7[%c0_26, %c32], %28 {strides = array<i32>} : memref<8x128xf32, #tpu.memory_space<vmem>>, vector<8x32xf32>,
      %c0_27 = arith.constant 0 : index
      %c0_28 = arith.constant 0 : index
      %30 = vector.load %arg3[%c0_27, %c0_28] : memref<8x32xf32, #tpu.memory_space<vmem>>, vector<8x32xf32>
      %c0_29 = arith.constant 0 : index
      %c32_30 = arith.constant 32 : index
      %31 = vector.load %arg8[%c0_29, %c32_30] : memref<8x128xf32, #tpu.memory_space<vmem>>, vector<8x32xf32>
      tpu.vector_store %arg8[%c0_29, %c32_30], %30 {strides = array<i32>} : memref<8x128xf32, #tpu.memory_space<vmem>>, vector<8x32xf32>,
      %c0_31 = arith.constant 0 : index
      %c0_32 = arith.constant 0 : index
      %32 = vector.load %arg4[%c0_31, %c0_32] : memref<8x32xf32, #tpu.memory_space<vmem>>, vector<8x32xf32>
      %c0_33 = arith.constant 0 : index
      %c32_34 = arith.constant 32 : index
      %33 = vector.load %arg9[%c0_33, %c32_34] : memref<8x128xf32, #tpu.memory_space<vmem>>, vector<8x32xf32>
      tpu.vector_store %arg9[%c0_33, %c32_34], %32 {strides = array<i32>} : memref<8x128xf32, #tpu.memory_space<vmem>>, vector<8x32xf32>,
      %c0_35 = arith.constant 0 : index
      %c0_36 = arith.constant 0 : index
      %34 = vector.load %arg2[%c0_35, %c0_36] : memref<8x32xf32, #tpu.memory_space<vmem>>, vector<8x32xf32>
      %c0_37 = arith.constant 0 : index
      %c64 = arith.constant 64 : index
      %35 = vector.load %arg7[%c0_37, %c64] : memref<8x128xf32, #tpu.memory_space<vmem>>, vector<8x32xf32>
      tpu.vector_store %arg7[%c0_37, %c64], %34 {strides = array<i32>} : memref<8x128xf32, #tpu.memory_space<vmem>>, vector<8x32xf32>,
      %c0_38 = arith.constant 0 : index
      %c0_39 = arith.constant 0 : index
      %36 = vector.load %arg3[%c0_38, %c0_39] : memref<8x32xf32, #tpu.memory_space<vmem>>, vector<8x32xf32>
      %c0_40 = arith.constant 0 : index
      %c64_41 = arith.constant 64 : index
      %37 = vector.load %arg8[%c0_40, %c64_41] : memref<8x128xf32, #tpu.memory_space<vmem>>, vector<8x32xf32>
      tpu.vector_store %arg8[%c0_40, %c64_41], %36 {strides = array<i32>} : memref<8x128xf32, #tpu.memory_space<vmem>>, vector<8x32xf32>,
      %c0_42 = arith.constant 0 : index
      %c0_43 = arith.constant 0 : index
      %38 = vector.load %arg4[%c0_42, %c0_43] : memref<8x32xf32, #tpu.memory_space<vmem>>, vector<8x32xf32>
      %c0_44 = arith.constant 0 : index
      %c64_45 = arith.constant 64 : index
      %39 = vector.load %arg9[%c0_44, %c64_45] : memref<8x128xf32, #tpu.memory_space<vmem>>, vector<8x32xf32>
      tpu.vector_store %arg9[%c0_44, %c64_45], %38 {strides = array<i32>} : memref<8x128xf32, #tpu.memory_space<vmem>>, vector<8x32xf32>,
      %c0_46 = arith.constant 0 : index
      %c0_47 = arith.constant 0 : index
      %40 = vector.load %arg2[%c0_46, %c0_47] : memref<8x32xf32, #tpu.memory_space<vmem>>, vector<8x32xf32>
      %c0_48 = arith.constant 0 : index
      %c96 = arith.constant 96 : index
      %41 = vector.load %arg7[%c0_48, %c96] : memref<8x128xf32, #tpu.memory_space<vmem>>, vector<8x32xf32>
      tpu.vector_store %arg7[%c0_48, %c96], %40 {strides = array<i32>} : memref<8x128xf32, #tpu.memory_space<vmem>>, vector<8x32xf32>,
      %c0_49 = arith.constant 0 : index
      %c0_50 = arith.constant 0 : index
      %42 = vector.load %arg3[%c0_49, %c0_50] : memref<8x32xf32, #tpu.memory_space<vmem>>, vector<8x32xf32>
      %c0_51 = arith.constant 0 : index
      %c96_52 = arith.constant 96 : index
      %43 = vector.load %arg8[%c0_51, %c96_52] : memref<8x128xf32, #tpu.memory_space<vmem>>, vector<8x32xf32>
      tpu.vector_store %arg8[%c0_51, %c96_52], %42 {strides = array<i32>} : memref<8x128xf32, #tpu.memory_space<vmem>>, vector<8x32xf32>,
      %c0_53 = arith.constant 0 : index
      %c0_54 = arith.constant 0 : index
      %44 = vector.load %arg4[%c0_53, %c0_54] : memref<8x32xf32, #tpu.memory_space<vmem>>, vector<8x32xf32>
      %c0_55 = arith.constant 0 : index
      %c96_56 = arith.constant 96 : index
      %45 = vector.load %arg9[%c0_55, %c96_56] : memref<8x128xf32, #tpu.memory_space<vmem>>, vector<8x32xf32>
      tpu.vector_store %arg9[%c0_55, %c96_56], %44 {strides = array<i32>} : memref<8x128xf32, #tpu.memory_space<vmem>>, vector<8x32xf32>,
    } else {
    }
    %c0 = arith.constant 0 : index
    %c0_1 = arith.constant 0 : index
    %c0_2 = arith.constant 0 : index
    %3 = vector.load %arg5[%c0, %c0_1, %c0_2] : memref<1x8x128xf32, #tpu.memory_space<vmem>>, vector<1x8x128xf32>
    %4 = vector.shape_cast %3 : vector<1x8x128xf32> to vector<8x128xf32>
    %5 = vector.extract_strided_slice %4 {offsets = [0, 16], sizes = [8, 112], strides = [1, 1]} : vector<8x128xf32> to vector<8x112xf32>
    %6 = vector.extract_strided_slice %4 {offsets = [0, 0], sizes = [8, 16], strides = [1, 1]} : vector<8x128xf32> to vector<8x16xf32>
    %7 = tpu.concatenate %5, %6 in 1 : vector<8x112xf32>, vector<8x16xf32> -> vector<8x128xf32>
    %8 = vector.extract_strided_slice %4 {offsets = [0, 112], sizes = [8, 16], strides = [1, 1]} : vector<8x128xf32> to vector<8x16xf32>
    %9 = vector.extract_strided_slice %4 {offsets = [0, 0], sizes = [8, 112], strides = [1, 1]} : vector<8x128xf32> to vector<8x112xf32>
    %10 = tpu.concatenate %8, %9 in 1 : vector<8x16xf32>, vector<8x112xf32> -> vector<8x128xf32>
    %c0_3 = arith.constant 0 : index
    %c0_4 = arith.constant 0 : index
    %11 = vector.load %arg7[%c0_3, %c0_4] : memref<8x128xf32, #tpu.memory_space<vmem>>, vector<8x128xf32>
    %12 = arith.mulf %4, %11 : vector<8x128xf32>
    %c0_5 = arith.constant 0 : index
    %c0_6 = arith.constant 0 : index
    %13 = vector.load %arg8[%c0_5, %c0_6] : memref<8x128xf32, #tpu.memory_space<vmem>>, vector<8x128xf32>
    %14 = arith.mulf %7, %13 : vector<8x128xf32>
    %15 = arith.addf %12, %14 : vector<8x128xf32>
    %c0_7 = arith.constant 0 : index
    %c0_8 = arith.constant 0 : index
    %16 = vector.load %arg9[%c0_7, %c0_8] : memref<8x128xf32, #tpu.memory_space<vmem>>, vector<8x128xf32>
    %17 = arith.mulf %10, %16 : vector<8x128xf32>
    %18 = arith.addf %15, %17 : vector<8x128xf32>
    %c0_9 = arith.constant 0 : index
    %c0_10 = arith.constant 0 : index
    %c0_11 = arith.constant 0 : index
    %19 = vector.load %arg6[%c0_9, %c0_10, %c0_11] : memref<1x8x128xf32, #tpu.memory_space<vmem>>, vector<1x8x128xf32>
    %20 = vector.shape_cast %19 : vector<1x8x128xf32> to vector<8x128xf32>
    %21 = vector.shape_cast %18 : vector<8x128xf32> to vector<1x8x128xf32>
    tpu.vector_store %arg6[%c0_9, %c0_10, %c0_11], %21 {strides = array<i32>} : memref<1x8x128xf32, #tpu.memory_space<vmem>>, vector<1x8x128xf32>,
    return
  }
  func.func @transform_0(%arg0: i32, %arg1: i32) -> (i32, i32) {
    %c0_i32 = arith.constant 0 : i32
    %c0_i32_0 = arith.constant 0 : i32
    return %arg0, %c0_i32 : i32, i32
  }
  func.func @transform_1(%arg0: i32, %arg1: i32) -> (i32, i32) {
    %c0_i32 = arith.constant 0 : i32
    %c0_i32_0 = arith.constant 0 : i32
    return %arg0, %c0_i32 : i32, i32
  }
  func.func @transform_2(%arg0: i32, %arg1: i32) -> (i32, i32) {
    %c0_i32 = arith.constant 0 : i32
    %c0_i32_0 = arith.constant 0 : i32
    return %arg0, %c0_i32 : i32, i32
  }
  func.func @transform_3(%arg0: i32, %arg1: i32) -> (i32, i32, i32) {
    %c0_i32 = arith.constant 0 : i32
    %c0_i32_0 = arith.constant 0 : i32
    return %arg1, %arg0, %c0_i32 : i32, i32, i32
  }
  func.func @transform_4(%arg0: i32, %arg1: i32) -> (i32, i32, i32) {
    %c0_i32 = arith.constant 0 : i32
    %c0_i32_0 = arith.constant 0 : i32
    return %arg1, %arg0, %c0_i32 : i32, i32, i32
  }
}

</mosaic_0001>

<llo_original>
// kernel: tpu_custom_call.1
$region0: #{tpu_custom_call.1}
  #allocation0 [shape = 'u32[]', space=smem, size = 0x4, offset = 0x4, fixed_abs, tag = 'smem constant byte address 0x4 - core index']
  #allocation1 [shape = 'u32[144,128]{1,0:T(1,128)}', space=vmem, size = 0x12000, scoped, tag = 'internal scratch']
  %s0 = inlined_call_operand.hbm [shape: f32[8,128], index: 0, kind: input, shape index: {}]
  %s1 = inlined_call_operand.hbm [shape: f32[8,128], index: 1, kind: output, shape index: {}]
  %s2 = sld [smem:[#allocation0]]
  $region18: #{tpu_custom_call.1} parent=0
    _
  %s4 = ssub.s32 1, %s2
  %s5 = scalar_select 0, %s4, %s2
  $region1: #{tpu_custom_call.1} parent=0
    #allocation2 [shape = 'u8[4096]{0}', space=vmem, size = 0x1000, scoped, tag = 'input window, operand 0, single buffered']
    #allocation3 [shape = 's32[1]{0}', space=sflag, size = 0x4, scoped, tag = 'scoped memory for tpu_custom_call.1']
    #allocation4 [shape = 's32[1]{0}', space=sflag, size = 0x4, scoped, tag = 'scoped memory for tpu_custom_call.1']
    #allocation5 [shape = 'u8[4096]{0}', space=vmem, size = 0x1000, scoped, tag = 'output window, operand 0, single buffered']
    %6 = vsyncpa [#allocation3], 0
    %7 = vsyncpa [#allocation4], 0
    // Predicated region
    $region2: #{tpu_custom_call.1} parent=1 // pred_check
      _
    $region3: #{tpu_custom_call.1} parent=1 // pred_check_branch
      %9 = sbr.rel (0) target = $region5
    $region4: #{tpu_custom_call.1} parent=1 // pred_region
      %s11 = ssub.s32 128, 128
      %12 = vsyncadd [#allocation3], %s11
      %s14 = sshll.u32 [#allocation2], 4
      %s15 = int_to_ptr.vmem [resolvable:$true] %s14
      %17 = dma.hbm_to_vmem [thread:$0]  %s0, 128, %s15, [#allocation3]
    $region5: #{tpu_custom_call.1} parent=1 // pred_fallthru
      _
    // Predicated region
    $region6: #{tpu_custom_call.1} parent=1 // pred_check
      _
    $region7: #{tpu_custom_call.1} parent=1 // pred_check_branch
      %19 = sbr.rel (0) target = $region9
    $region8: #{tpu_custom_call.1} parent=1 // pred_region
      %20 = dma.done [#allocation3], 128
    $region9: #{tpu_custom_call.1} parent=1 // pred_fallthru
      _
    %v21 = vld [vmem:[#allocation2] sm:$0xff]
    %22 = vrot.lane.b32.xlu0 %v21, 1
    %v23 = vpop.permute.xlu0 %22
    %24 = vst [vmem:[#allocation5] sm:$0xff] %v23
    // Predicated region
    $region10: #{tpu_custom_call.1} parent=1 // pred_check
      _
    $region11: #{tpu_custom_call.1} parent=1 // pred_check_branch
      %26 = sbr.rel (0) target = $region13
    $region12: #{tpu_custom_call.1} parent=1 // pred_region
      %s28 = ssub.s32 128, 128
      %29 = vsyncadd [#allocation4], %s28
      %s31 = sshll.u32 [#allocation5], 4
      %s32 = int_to_ptr.vmem [resolvable:$true] %s31
      %34 = dma.vmem_to_hbm [thread:$0]  %s32, 128, %s1, [#allocation4]
    $region13: #{tpu_custom_call.1} parent=1 // pred_fallthru
      _
    // Predicated region
    $region14: #{tpu_custom_call.1} parent=1 // pred_check
      _
    $region15: #{tpu_custom_call.1} parent=1 // pred_check_branch
      %36 = sbr.rel (0) target = $region17
    $region16: #{tpu_custom_call.1} parent=1 // pred_region
      %37 = dma.done [#allocation4], 128
    $region17: #{tpu_custom_call.1} parent=1 // pred_fallthru
      _
    %38 = vsyncpa [#allocation3], 1
    %39 = vsyncpa [#allocation4], 1

// kernel: tpu_custom_call.1
$region0: #{tpu_custom_call.1}
  #allocation0 [shape = 'u32[]', space=smem, size = 0x4, offset = 0x4, fixed_abs, tag = 'smem constant byte address 0x4 - core index']
  #allocation1 [shape = 'u32[144,128]{1,0:T(1,128)}', space=vmem, size = 0x12000, scoped, tag = 'internal scratch']
  #allocation2 [shape = 'f32[8,128]{1,0:T(8,128)}', space=vmem, size = 0x1000, scoped, tag = 'scratch operand']
  #allocation3 [shape = 'f32[8,128]{1,0:T(8,128)}', space=vmem, size = 0x1000, scoped, tag = 'scratch operand']
  #allocation4 [shape = 'f32[8,128]{1,0:T(8,128)}', space=vmem, size = 0x1000, scoped, tag = 'scratch operand']
  %s0 = inlined_call_operand.hbm [shape: f32[8,32], index: 0, kind: input, shape index: {}]
  %s1 = inlined_call_operand.hbm [shape: f32[8,32], index: 1, kind: input, shape index: {}]
  %s2 = inlined_call_operand.hbm [shape: f32[8,32], index: 2, kind: input, shape index: {}]
  %s3 = inlined_call_operand.hbm [shape: f32[2,8,128], index: 3, kind: input, shape index: {}]
  %s4 = inlined_call_operand.hbm [shape: f32[2,8,128], index: 4, kind: output, shape index: {}]
  %s5 = sld [smem:[#allocation0]]
  $region69: #{tpu_custom_call.1} parent=0
    _
  %s7 = ssub.s32 1, %s5
  %s8 = scalar_select 0, %s7, %s5
  $region1: #{tpu_custom_call.1} parent=0
    #allocation5 [shape = 'u8[4096]{0}', space=vmem, size = 0x1000, scoped, tag = 'input window, operand 0, single buffered']
    #allocation6 [shape = 's32[2]{0}', space=sflag, size = 0x8, scoped, tag = 'scoped memory for tpu_custom_call.1']
    #allocation7 [shape = 's32[2]{0}', space=sflag, size = 0x8, scoped, tag = 'scoped memory for tpu_custom_call.1']
    #allocation8 [shape = 'u8[4096]{0}', space=vmem, size = 0x1000, scoped, tag = 'input window, operand 1, single buffered']
    #allocation9 [shape = 's32[1]{0}', space=sflag, size = 0x4, scoped, tag = 'scoped memory for tpu_custom_call.1']
    #allocation10 [shape = 'u8[4096]{0}', space=vmem, size = 0x1000, scoped, tag = 'input window, operand 2, single buffered']
    #allocation11 [shape = 'u8[8192]{0}', space=vmem, size = 0x2000, scoped, tag = 'input window, operand 3']
    #allocation12 [shape = 's32[2]{0}', space=sflag, size = 0x8, scoped, tag = 'scoped memory for tpu_custom_call.1']
    #allocation13 [shape = 'u8[8192]{0}', space=vmem, size = 0x2000, scoped, tag = 'output window, operand 0']
    %9 = vsyncpa [#allocation6], 0
    %10 = vsyncpa [#allocation9], 0
    %11 = vsyncpa [#allocation12], 0
    %s12 = scalar_lea.sflag [#allocation12], 1
    %13 = vsyncpa %s12, 0
    %14 = vsyncpa [#allocation7], 0
    %s15 = scalar_lea.sflag [#allocation7], 1
    %16 = vsyncpa %s15, 0
    loop: start=0, step=1, limit=4
    $region2: #{tpu_custom_call.1} parent=1 // loop_pre_header
      _
    $region3: #{tpu_custom_call.1} parent=1 // loop_header
      %s18 = sphi 0, %s22
      %p19 = scmp.ge.s32.totalorder %s18, 4
      %s25 = sphi 0, %s37
      %s26 = sphi 0, %s33
      %s27 = sphi 0, %s25
      %s28 = sphi 0, %s26
      %s29 = sphi 0, %s27
      %s30 = sphi 0, %s28
      %s40 = sphi 0, %s42
      %s43 = sphi 0, %s40
      %s44 = sphi 0, %s43
      %s60 = sphi 0, %s44
      %s66 = sphi 0, %s68
      %s69 = sphi 0, %s66
      %s70 = sphi 0, %s69
      %s86 = sphi 0, %s70
      %s92 = sphi 0, %s94
      %s95 = sphi 0, %s92
      %s96 = sphi 0, %s95
      %s112 = sphi 0, %s96
      %s120 = sphi 0, %s122
      %s123 = sphi 0, %s120
      %s124 = sphi 0, %s123
      %s140 = sphi 0, %s124
      %s148 = sphi 0, %s150
      %s151 = sphi 0, %s148
      %s152 = sphi 0, %s151
      %s168 = sphi 0, %s152
    $region4: #{tpu_custom_call.1} parent=1 // loop_header_branch
      %21 = sbr.rel (%p19) target = $region8
    $region5: #{tpu_custom_call.1} parent=1 // loop_body
      %s23 = ssub.s32 %s18, 1
      %s24 = ssub.s32 %s18, 2
      %s31 = sadd.s32 1, %s26
      %p32 = scmp.ge.s32.totalorder %s31, 2
      %s33 = scalar_select %p32, 0, %s31
      %s34 = sadd.s32 1, %s25
      %s35 = scalar_select %p32, %s34, %s25
      %p36 = scmp.ge.s32.totalorder %s35, 1
      %s37 = scalar_select %p36, 0, %s35
      %s38 = ssub.s32 %s25, %s37
      %p39 = scmp.eq.s32.totalorder %s38, 0
      %s41 = sadd.s32 %s40, 1
      %s42 = scalar_select %p39, %s40, %s41
      %p45 = pneg %p39
      %p46 = scmp.eq.s32.totalorder %s18, 1
      %p47 = por %p45, %p46
      %p48 = scmp.ne.s32.totalorder %s40, %s43
      %p49 = scmp.eq.s32.totalorder %s18, 0
      %p50 = por %p48, %p49
      %p51 = scmp.ne.s32.totalorder %s40, %s43
      %p52 = scmp.eq.s32.totalorder %s23, 1
      %p53 = por %p51, %p52
      %p54 = scmp.ne.s32.totalorder %s43, %s44
      %p55 = scmp.eq.s32.totalorder %s23, 0
      %p56 = por %p54, %p55
      %p57 = scmp.ne.s32.totalorder %s43, %s44
      %p58 = scmp.eq.s32.totalorder %s24, 1
      %p59 = por %p57, %p58
      %p61 = scmp.ne.s32.totalorder %s44, %s60
      %p62 = scmp.eq.s32.totalorder %s24, 0
      %p63 = por %p61, %p62
      %s64 = ssub.s32 %s25, %s37
      %p65 = scmp.eq.s32.totalorder %s64, 0
      %s67 = sadd.s32 %s66, 1
      %s68 = scalar_select %p65, %s66, %s67
      %p71 = pneg %p65
      %p72 = scmp.eq.s32.totalorder %s18, 1
      %p73 = por %p71, %p72
      %p74 = scmp.ne.s32.totalorder %s66, %s69
      %p75 = scmp.eq.s32.totalorder %s18, 0
      %p76 = por %p74, %p75
      %p77 = scmp.ne.s32.totalorder %s66, %s69
      %p78 = scmp.eq.s32.totalorder %s23, 1
      %p79 = por %p77, %p78
      %p80 = scmp.ne.s32.totalorder %s69, %s70
      %p81 = scmp.eq.s32.totalorder %s23, 0
      %p82 = por %p80, %p81
      %p83 = scmp.ne.s32.totalorder %s69, %s70
      %p84 = scmp.eq.s32.totalorder %s24, 1
      %p85 = por %p83, %p84
      %p87 = scmp.ne.s32.totalorder %s70, %s86
      %p88 = scmp.eq.s32.totalorder %s24, 0
      %p89 = por %p87, %p88
      %s90 = ssub.s32 %s25, %s37
      %p91 = scmp.eq.s32.totalorder %s90, 0
      %s93 = sadd.s32 %s92, 1
      %s94 = scalar_select %p91, %s92, %s93
      %p97 = pneg %p91
      %p98 = scmp.eq.s32.totalorder %s18, 1
      %p99 = por %p97, %p98
      %p100 = scmp.ne.s32.totalorder %s92, %s95
      %p101 = scmp.eq.s32.totalorder %s18, 0
      %p102 = por %p100, %p101
      %p103 = scmp.ne.s32.totalorder %s92, %s95
      %p104 = scmp.eq.s32.totalorder %s23, 1
      %p105 = por %p103, %p104
      %p106 = scmp.ne.s32.totalorder %s95, %s96
      %p107 = scmp.eq.s32.totalorder %s23, 0
      %p108 = por %p106, %p107
      %p109 = scmp.ne.s32.totalorder %s95, %s96
      %p110 = scmp.eq.s32.totalorder %s24, 1
      %p111 = por %p109, %p110
      %p113 = scmp.ne.s32.totalorder %s96, %s112
      %p114 = scmp.eq.s32.totalorder %s24, 0
      %p115 = por %p113, %p114
      %s116 = ssub.s32 %s26, %s33
      %s117 = ssub.s32 %s25, %s37
      %s118 = sor.u32 %s116, %s117
      %p119 = scmp.eq.s32.totalorder %s118, 0
      %s121 = sadd.s32 %s120, 1
      %s122 = scalar_select %p119, %s120, %s121
      %p125 = pneg %p119
      %p126 = scmp.eq.s32.totalorder %s18, 1
      %p127 = por %p125, %p126
      %p128 = scmp.ne.s32.totalorder %s120, %s123
      %p129 = scmp.eq.s32.totalorder %s18, 0
      %p130 = por %p128, %p129
      %p131 = scmp.ne.s32.totalorder %s120, %s123
      %p132 = scmp.eq.s32.totalorder %s23, 1
      %p133 = por %p131, %p132
      %p134 = scmp.ne.s32.totalorder %s123, %s124
      %p135 = scmp.eq.s32.totalorder %s23, 0
      %p136 = por %p134, %p135
      %p137 = scmp.ne.s32.totalorder %s123, %s124
      %p138 = scmp.eq.s32.totalorder %s24, 1
      %p139 = por %p137, %p138
      %p141 = scmp.ne.s32.totalorder %s124, %s140
      %p142 = scmp.eq.s32.totalorder %s24, 0
      %p143 = por %p141, %p142
      %s144 = ssub.s32 %s26, %s33
      %s145 = ssub.s32 %s25, %s37
      %s146 = sor.u32 %s144, %s145
      %p147 = scmp.eq.s32.totalorder %s146, 0
      %s149 = sadd.s32 %s148, 1
      %s150 = scalar_select %p147, %s148, %s149
      %p153 = pneg %p147
      %p154 = scmp.eq.s32.totalorder %s18, 1
      %p155 = por %p153, %p154
      %p156 = scmp.ne.s32.totalorder %s148, %s151
      %p157 = scmp.eq.s32.totalorder %s18, 0
      %p158 = por %p156, %p157
      %p159 = scmp.ne.s32.totalorder %s148, %s151
      %p160 = scmp.eq.s32.totalorder %s23, 1
      %p161 = por %p159, %p160
      %p162 = scmp.ne.s32.totalorder %s151, %s152
      %p163 = scmp.eq.s32.totalorder %s23, 0
      %p164 = por %p162, %p163
      %p165 = scmp.ne.s32.totalorder %s151, %s152
      %p166 = scmp.eq.s32.totalorder %s24, 1
      %p167 = por %p165, %p166
      %p169 = scmp.ne.s32.totalorder %s152, %s168
      %p170 = scmp.eq.s32.totalorder %s24, 0
      %p171 = por %p169, %p170
      %p172 = scmp.le.s32.totalorder 1, %s18
      %p173 = scmp.lt.s32.totalorder %s18, 3
      %p174 = pnand %p172, %p173
      %p175 = pneg %p174
      // Predicated region
      $region9: #{tpu_custom_call.1} parent=5 // pred_check
        _
      $region10: #{tpu_custom_call.1} parent=5 // pred_check_branch
        %177 = sbr.rel (%p174) target = $region12
      $region11: #{tpu_custom_call.1} parent=5 // pred_region
        %s178 = ssub.s32 %s18, 1
        // Predicated region
        $region13: #{tpu_custom_call.1} parent=11 // pred_check
          %p179 = pneg %p56
        $region14: #{tpu_custom_call.1} parent=11 // pred_check_branch
          %181 = sbr.rel (%p179) target = $region16
        $region15: #{tpu_custom_call.1} parent=11 // pred_region
          %s183 = ssub.s32 128, 128
          %184 = vsyncadd [#allocation6], %s183
          %s185 = smul.addr %s27, 128
          %s186 = scalar_lea.hbm %s0, %s185
          %s188 = sshll.u32 [#allocation5], 4
          %s189 = int_to_ptr.vmem [resolvable:$true] %s188
          %191 = dma.hbm_to_vmem [thread:$0]  %s186, 128, %s189, [#allocation6]
        $region16: #{tpu_custom_call.1} parent=11 // pred_fallthru
          _
        // Predicated region
        $region17: #{tpu_custom_call.1} parent=11 // pred_check
          %p192 = pneg %p82
        $region18: #{tpu_custom_call.1} parent=11 // pred_check_branch
          %194 = sbr.rel (%p192) target = $region20
        $region19: #{tpu_custom_call.1} parent=11 // pred_region
          %s196 = ssub.s32 128, 128
          %197 = vsyncadd [#allocation9], %s196
          %s198 = smul.addr %s27, 128
          %s199 = scalar_lea.hbm %s1, %s198
          %s201 = sshll.u32 [#allocation8], 4
          %s202 = int_to_ptr.vmem [resolvable:$true] %s201
          %204 = dma.hbm_to_vmem [thread:$0]  %s199, 128, %s202, [#allocation9]
        $region20: #{tpu_custom_call.1} parent=11 // pred_fallthru
          _
        // Predicated region
        $region21: #{tpu_custom_call.1} parent=11 // pred_check
          %p205 = pneg %p108
        $region22: #{tpu_custom_call.1} parent=11 // pred_check_branch
          %207 = sbr.rel (%p205) target = $region24
        $region23: #{tpu_custom_call.1} parent=11 // pred_region
          %s209 = ssub.s32 128, 128
          %210 = vsyncadd [#allocation9], %s209
          %s211 = smul.addr %s27, 128
          %s212 = scalar_lea.hbm %s2, %s211
          %s214 = sshll.u32 [#allocation10], 4
          %s215 = int_to_ptr.vmem [resolvable:$true] %s214
          %217 = dma.hbm_to_vmem [thread:$0]  %s212, 128, %s215, [#allocation9]
        $region24: #{tpu_custom_call.1} parent=11 // pred_fallthru
          _
      $region12: #{tpu_custom_call.1} parent=5 // pred_fallthru
        _
      %p218 = scmp.lt.s32.totalorder %s18, 2
      // Predicated region
      $region25: #{tpu_custom_call.1} parent=5 // pred_check
        %p219 = pneg %p218
      $region26: #{tpu_custom_call.1} parent=5 // pred_check_branch
        %221 = sbr.rel (%p219) target = $region28
      $region27: #{tpu_custom_call.1} parent=5 // pred_region
        // Predicated region
        $region29: #{tpu_custom_call.1} parent=27 // pred_check
          %p222 = pneg %p130
        $region30: #{tpu_custom_call.1} parent=27 // pred_check_branch
          %224 = sbr.rel (%p222) target = $region32
        $region31: #{tpu_custom_call.1} parent=27 // pred_region
          %s225 = sand.u32 %s120, 1
          %s226 = scalar_lea.sflag [#allocation12], %s225
          %s227 = sand.u32 %s120, 1
          %s228 = smul.addr %s227, 8
          %s229 = scalar_lea.vmem [#allocation11], %s228
          %s231 = ssub.s32 128, 128
          %232 = vsyncadd %s226, %s231
          %s233 = sadd.s32 %s25, %s26
          %s234 = smul.addr %s233, 128
          %s235 = scalar_lea.hbm %s3, %s234
          %s237 = sshll.u32 %s229, 4
          %s238 = int_to_ptr.vmem [resolvable:$true] %s237
          %240 = dma.hbm_to_vmem [thread:$0]  %s235, 128, %s238, %s226
        $region32: #{tpu_custom_call.1} parent=27 // pred_fallthru
          _
      $region28: #{tpu_custom_call.1} parent=5 // pred_fallthru
        _
      %p241 = scmp.le.s32.totalorder 1, %s18
      %p242 = scmp.lt.s32.totalorder %s18, 3
      %p243 = pnand %p241, %p242
      %p244 = pneg %p243
      // Predicated region
      $region33: #{tpu_custom_call.1} parent=5 // pred_check
        _
      $region34: #{tpu_custom_call.1} parent=5 // pred_check_branch
        %246 = sbr.rel (%p243) target = $region36
      $region35: #{tpu_custom_call.1} parent=5 // pred_region
        %s247 = ssub.s32 %s18, 1
        // Predicated region
        $region37: #{tpu_custom_call.1} parent=35 // pred_check
          %p248 = pneg %p56
        $region38: #{tpu_custom_call.1} parent=35 // pred_check_branch
          %250 = sbr.rel (%p248) target = $region40
        $region39: #{tpu_custom_call.1} parent=35 // pred_region
          %251 = dma.done [#allocation6], 128
        $region40: #{tpu_custom_call.1} parent=35 // pred_fallthru
          _
        // Predicated region
        $region41: #{tpu_custom_call.1} parent=35 // pred_check
          %p252 = pneg %p82
        $region42: #{tpu_custom_call.1} parent=35 // pred_check_branch
          %254 = sbr.rel (%p252) target = $region44
        $region43: #{tpu_custom_call.1} parent=35 // pred_region
          %255 = dma.done [#allocation9], 128
        $region44: #{tpu_custom_call.1} parent=35 // pred_fallthru
          _
        // Predicated region
        $region45: #{tpu_custom_call.1} parent=35 // pred_check
          %p256 = pneg %p108
        $region46: #{tpu_custom_call.1} parent=35 // pred_check_branch
          %258 = sbr.rel (%p256) target = $region48
        $region47: #{tpu_custom_call.1} parent=35 // pred_region
          %259 = dma.done [#allocation9], 128
        $region48: #{tpu_custom_call.1} parent=35 // pred_fallthru
          _
        %s260 = sand.u32 %s123, 1
        %s261 = scalar_lea.sflag [#allocation12], %s260
        %s262 = sand.u32 %s123, 1
        %s263 = smul.addr %s262, 8
        %s264 = scalar_lea.vmem [#allocation11], %s263
        // Predicated region
        $region49: #{tpu_custom_call.1} parent=35 // pred_check
          %p265 = pneg %p136
        $region50: #{tpu_custom_call.1} parent=35 // pred_check_branch
          %267 = sbr.rel (%p265) target = $region52
        $region51: #{tpu_custom_call.1} parent=35 // pred_region
          %268 = dma.done %s261, 128
        $region52: #{tpu_custom_call.1} parent=35 // pred_fallthru
          _
        %p269 = pneg %p56
        %p270 = pneg %p53
        %p271 = pneg %p82
        %p272 = pneg %p79
        %p273 = pneg %p108
        %p274 = pneg %p105
        %s275 = sand.u32 %s123, 1
        %s276 = scalar_lea.sflag [#allocation12], %s275
        %s277 = sand.u32 %s123, 1
        %s278 = smul.addr %s277, 8
        %s279 = scalar_lea.vmem [#allocation11], %s278
        %p280 = pneg %p136
        %p281 = pneg %p133
        %p282 = pneg %p164
        %p283 = pneg %p161
        %s284 = sand.u32 %s151, 1
        %s285 = scalar_lea.sflag [#allocation7], %s284
        %s286 = sand.u32 %s151, 1
        %s287 = smul.addr %s286, 8
        %s288 = scalar_lea.vmem [#allocation13], %s287
        %p289 = scmp.eq.s32.totalorder %s28, 0
        // Predicated region
        $region53: #{tpu_custom_call.1} parent=35 // pred_check
          %p290 = pneg %p289
        $region54: #{tpu_custom_call.1} parent=35 // pred_check_branch
          %292 = sbr.rel (%p290) target = $region56
        $region55: #{tpu_custom_call.1} parent=35 // pred_region
          %v293 = vld [vmem:[#allocation5] sm:$0xff]
          %vm294 = vcmask 261120
          %295 = vst.msk [vmem:[#allocation2] sm:$0xff] %vm294, %v293
          %v296 = vld [vmem:[#allocation8] sm:$0xff]
          %297 = vst.msk [vmem:[#allocation3] sm:$0xff] %vm294, %v296
          %v298 = vld [vmem:[#allocation10] sm:$0xff]
          %299 = vst.msk [vmem:[#allocation4] sm:$0xff] %vm294, %v298
          %v300 = vld [vmem:[#allocation5] sm:$0xff]
          %302 = vrot.lane.b32.xlu0 %v300, 32
          %v303 = vpop.permute.xlu0 %302
          %vm305 = vcmask 523520
          %306 = vst.msk [vmem:[#allocation2] sm:$0xff] %vm305, %v303
          %v307 = vld [vmem:[#allocation8] sm:$0xff]
          %309 = vrot.lane.b32.xlu0 %v307, 32
          %v310 = vpop.permute.xlu0 %309
          %312 = vst.msk [vmem:[#allocation3] sm:$0xff] %vm305, %v310
          %v313 = vld [vmem:[#allocation10] sm:$0xff]
          %315 = vrot.lane.b32.xlu0 %v313, 32
          %v316 = vpop.permute.xlu0 %315
          %318 = vst.msk [vmem:[#allocation4] sm:$0xff] %vm305, %v316
          %v319 = vld [vmem:[#allocation5] sm:$0xff]
          %321 = vrot.lane.b32.xlu0 %v319, 64
          %v322 = vpop.permute.xlu0 %321
          %vm324 = vcmask 785920
          %325 = vst.msk [vmem:[#allocation2] sm:$0xff] %vm324, %v322
          %v326 = vld [vmem:[#allocation8] sm:$0xff]
          %328 = vrot.lane.b32.xlu0 %v326, 64
          %v329 = vpop.permute.xlu0 %328
          %331 = vst.msk [vmem:[#allocation3] sm:$0xff] %vm324, %v329
          %v332 = vld [vmem:[#allocation10] sm:$0xff]
          %334 = vrot.lane.b32.xlu0 %v332, 64
          %v335 = vpop.permute.xlu0 %334
          %337 = vst.msk [vmem:[#allocation4] sm:$0xff] %vm324, %v335
          %v338 = vld [vmem:[#allocation5] sm:$0xff]
          %340 = vrot.lane.b32.xlu0 %v338, 96
          %v341 = vpop.permute.xlu0 %340
          %vm343 = vcmask 1048320
          %344 = vst.msk [vmem:[#allocation2] sm:$0xff] %vm343, %v341
          %v345 = vld [vmem:[#allocation8] sm:$0xff]
          %347 = vrot.lane.b32.xlu0 %v345, 96
          %v348 = vpop.permute.xlu0 %347
          %350 = vst.msk [vmem:[#allocation3] sm:$0xff] %vm343, %v348
          %v351 = vld [vmem:[#allocation10] sm:$0xff]
          %353 = vrot.lane.b32.xlu0 %v351, 96
          %v354 = vpop.permute.xlu0 %353
          %356 = vst.msk [vmem:[#allocation4] sm:$0xff] %vm343, %v354
        $region56: #{tpu_custom_call.1} parent=35 // pred_fallthru
          _
        %v357 = vld [vmem:[%s264] sm:$0xff]
        %359 = vrot.lane.b32.xlu0 %v357, 112
        %v360 = vpop.permute.xlu0 %359
        %362 = vrot.lane.b32.xlu0 %v357, 16
        %v363 = vpop.permute.xlu0 %362
        %v365 = vld [vmem:[#allocation2] sm:$0xff]
        %v366 = vmul.f32 %v357, %v365
        %v367 = vld [vmem:[#allocation3] sm:$0xff]
        %v368 = vmul.f32 %v360, %v367
        %v369 = vadd.f32 %v366, %v368
        %v370 = vld [vmem:[#allocation4] sm:$0xff]
        %v371 = vmul.f32 %v363, %v370
        %v372 = vadd.f32 %v369, %v371
        %373 = vst [vmem:[%s288] sm:$0xff] %v372
        %s374 = sand.u32 %s151, 1
        %s375 = scalar_lea.sflag [#allocation7], %s374
        %s376 = sand.u32 %s151, 1
        %s377 = smul.addr %s376, 8
        %s378 = scalar_lea.vmem [#allocation13], %s377
        // Predicated region
        $region57: #{tpu_custom_call.1} parent=35 // pred_check
          %p379 = pneg %p161
        $region58: #{tpu_custom_call.1} parent=35 // pred_check_branch
          %381 = sbr.rel (%p379) target = $region60
        $region59: #{tpu_custom_call.1} parent=35 // pred_region
          %s383 = ssub.s32 128, 128
          %384 = vsyncadd %s375, %s383
          %s385 = sadd.s32 %s27, %s28
          %s386 = smul.addr %s385, 128
          %s387 = scalar_lea.hbm %s4, %s386
          %s389 = sshll.u32 %s378, 4
          %s390 = int_to_ptr.vmem [resolvable:$true] %s389
          %392 = dma.vmem_to_hbm [thread:$0]  %s390, 128, %s387, %s375
        $region60: #{tpu_custom_call.1} parent=35 // pred_fallthru
          _
      $region36: #{tpu_custom_call.1} parent=5 // pred_fallthru
        _
      %p393 = scmp.le.s32.totalorder 2, %s18
      // Predicated region
      $region61: #{tpu_custom_call.1} parent=5 // pred_check
        %p394 = pneg %p393
      $region62: #{tpu_custom_call.1} parent=5 // pred_check_branch
        %396 = sbr.rel (%p394) target = $region64
      $region63: #{tpu_custom_call.1} parent=5 // pred_region
        %s397 = ssub.s32 %s18, 2
        // Predicated region
        $region65: #{tpu_custom_call.1} parent=63 // pred_check
          %p398 = pneg %p167
        $region66: #{tpu_custom_call.1} parent=63 // pred_check_branch
          %400 = sbr.rel (%p398) target = $region68
        $region67: #{tpu_custom_call.1} parent=63 // pred_region
          %s401 = sand.u32 %s152, 1
          %s402 = scalar_lea.sflag [#allocation7], %s401
          %s403 = sand.u32 %s152, 1
          %s404 = smul.addr %s403, 8
          %s405 = scalar_lea.vmem [#allocation13], %s404
          %406 = dma.done %s402, 128
        $region68: #{tpu_custom_call.1} parent=63 // pred_fallthru
          _
      $region64: #{tpu_custom_call.1} parent=5 // pred_fallthru
        _
    $region6: #{tpu_custom_call.1} parent=1 // loop_footer
      %s22 = sadd.s32 1, %s18
    $region7: #{tpu_custom_call.1} parent=1 // loop_footer_branch
      %17 = sbr.rel target = $region3
    $region8: #{tpu_custom_call.1} parent=1 // loop_exit
      _
    %407 = vsyncpa [#allocation6], 1
    %s408 = scalar_lea.sflag [#allocation6], 1
    %409 = vsyncpa %s408, 1
    %410 = vsyncpa [#allocation9], 1
    %411 = vsyncpa [#allocation12], 1
    %s412 = scalar_lea.sflag [#allocation12], 1
    %413 = vsyncpa %s412, 1
    %414 = vsyncpa [#allocation7], 1
    %s415 = scalar_lea.sflag [#allocation7], 1
    %416 = vsyncpa %s415, 1

</llo_original>
